<compile_context>
chip_gen: v6e
topology: v6e:2x2x1
jax: 0.10.0
libtpu: 0.0.40
codegen_flags: <defaults>
</compile_context>

<pallas_src>
import functools

import jax
import jax.numpy as jnp
from jax.experimental import pallas as pl
from jax.experimental.pallas import tpu as pltpu

# ---- static model config (small, consistent with the module) ----------------
N_INDEPENDENT = 16
N_DEPENDENT = 4
N_HIDDEN = 32
HIDDEN_DEPTH = 2
BATCH = 256          # test batch -> single grid step at tb=256
TB_MAX = 1024        # max batch tile along the lane axis (multiple of 128)


def hidden_net_kernel(x_ref, w_in_ref, b_in_ref, w_h_ref, b_h_ref,
                      w_out_ref, b_out_ref, o_ref):
    # Transposed layout: everything is (features, batch); batch fills lanes.
    xT = x_ref[...]                              # (n_independent, TB)
    b_in = b_in_ref[...]                         # (n_hidden, 1) -> lane broadcast
    b_out = b_out_ref[...]                       # (n_dependent, 1)

    # input layer + activation (tanh for every activation slot)
    h = jnp.dot(w_in_ref[...], xT, preferred_element_type=jnp.float32) + b_in
    h = jnp.tanh(h)

    # hidden layers + activations (static unroll; HIDDEN_DEPTH is a constant)
    for i in range(HIDDEN_DEPTH):
        h = jnp.dot(w_h_ref[i], h, preferred_element_type=jnp.float32) + b_h_ref[i]
        h = jnp.tanh(h)

    # output layer (no activation, matching the PyTorch forward)
    o_ref[...] = (jnp.dot(w_out_ref[...], h, preferred_element_type=jnp.float32)
                  + b_out).astype(o_ref.dtype)


@functools.partial(jax.jit, static_argnames=("tb_max",))
def hidden_net_forward(x, params, tb_max=TB_MAX):
    (w_in, b_in, w_h, b_h, w_out, b_out) = params
    B = x.shape[0]

    # Batch tile along the lane axis: multiple of 128. Small batches run as a
    # single grid step (no per-step overhead); big batches tile at tb_max.
    if B <= tb_max:
        tb = max(128, ((B + 127) // 128) * 128)
    else:
        tb = tb_max
    Bp = ((B + tb - 1) // tb) * tb

    # Transpose to (features, batch) in the wrapper (XLA), pad batch to Bp.
    xT = x.T
    if Bp != B:
        xT = jnp.pad(xT, ((0, 0), (0, Bp - B)))

    grid = (Bp // tb,)
    # Only shard across v7x's 2 TensorCores when each core gets >= 2 steps.
    dim_sem = ("parallel",) if grid[0] >= 4 else ("arbitrary",)

    # Cost estimate (per full call) for XLA scheduling around the custom call.
    flops = 2 * Bp * (N_INDEPENDENT * N_HIDDEN
                      + HIDDEN_DEPTH * N_HIDDEN * N_HIDDEN
                      + N_HIDDEN * N_DEPENDENT)
    transcendentals = Bp * (1 + HIDDEN_DEPTH) * N_HIDDEN
    bytes_accessed = 4 * (
        Bp * N_INDEPENDENT + Bp * N_DEPENDENT
        + N_HIDDEN * N_INDEPENDENT + N_HIDDEN
        + HIDDEN_DEPTH * (N_HIDDEN * N_HIDDEN + N_HIDDEN)
        + N_DEPENDENT * N_HIDDEN + N_DEPENDENT)

    # xT / oT are tiled over the batch grid (lane axis); all weights & biases
    # use constant index maps -> DMA'd once, VMEM-resident across steps.
    in_specs = [
        pl.BlockSpec((N_INDEPENDENT, tb), lambda i: (0, i)),                     # xT
        pl.BlockSpec((N_HIDDEN, N_INDEPENDENT), lambda i: (0, 0)),               # w_in (out,in)
        pl.BlockSpec((N_HIDDEN, 1), lambda i: (0, 0)),                           # b_in (out,1)
        pl.BlockSpec((HIDDEN_DEPTH, N_HIDDEN, N_HIDDEN), lambda i: (0, 0, 0)),   # w_h
        pl.BlockSpec((HIDDEN_DEPTH, N_HIDDEN, 1), lambda i: (0, 0, 0)),          # b_h
        pl.BlockSpec((N_DEPENDENT, N_HIDDEN), lambda i: (0, 0)),                 # w_out
        pl.BlockSpec((N_DEPENDENT, 1), lambda i: (0, 0)),                        # b_out
    ]
    out_specs = pl.BlockSpec((N_DEPENDENT, tb), lambda i: (0, i))

    oT = pl.pallas_call(
        hidden_net_kernel,
        out_shape=jax.ShapeDtypeStruct((N_DEPENDENT, Bp), jnp.float32),
        grid=grid,
        in_specs=in_specs,
        out_specs=out_specs,
        compiler_params=pltpu.CompilerParams(
            dimension_semantics=dim_sem,
            vmem_limit_bytes=8 * 1024 * 1024,  # tiles+weights << 1 MiB; ample headroom
        ),
        cost_estimate=pl.CostEstimate(
            flops=flops,
            transcendentals=transcendentals,
            bytes_accessed=bytes_accessed,
        ),
    )(xT, w_in, b_in, w_h, b_h, w_out, b_out)

    # Back to (batch, n_dependent) in the wrapper.
    return oT[:, :B].T


def init_params(key):
    ks = jax.random.split(key, 6)
    scale = 0.1
    # PyTorch-native (out_features, in_features) weights; (out_features, 1) biases.
    w_in = scale * jax.random.normal(ks[0], (N_HIDDEN, N_INDEPENDENT), jnp.float32)
    b_in = scale * jax.random.normal(ks[1], (N_HIDDEN, 1), jnp.float32)
    w_h = scale * jax.random.normal(ks[2], (HIDDEN_DEPTH, N_HIDDEN, N_HIDDEN), jnp.float32)
    b_h = scale * jax.random.normal(ks[3], (HIDDEN_DEPTH, N_HIDDEN, 1), jnp.float32)
    w_out = scale * jax.random.normal(ks[4], (N_DEPENDENT, N_HIDDEN), jnp.float32)
    b_out = scale * jax.random.normal(ks[5], (N_DEPENDENT, 1), jnp.float32)
    return (w_in, b_in, w_h, b_h, w_out, b_out)


def reference_forward(x, params):
    (w_in, b_in, w_h, b_h, w_out, b_out) = params
    h = jnp.tanh(x @ w_in.T + b_in[:, 0])
    for i in range(HIDDEN_DEPTH):
        h = jnp.tanh(h @ w_h[i].T + b_h[i, :, 0])
    return h @ w_out.T + b_out[:, 0]


if __name__ == "__main__":
    key = jax.random.PRNGKey(0)
    k_x, k_p = jax.random.split(key)
    params = init_params(k_p)

    # Main path: B=256 -> one lane-dense grid step (tb=256).
    x = jax.random.normal(k_x, (BATCH, N_INDEPENDENT), jnp.float32)
    out = jax.block_until_ready(hidden_net_forward(x, params))
    ref = reference_forward(x, params)
    assert out.shape == (BATCH, N_DEPENDENT)
    assert jnp.allclose(out, ref, atol=1e-5, rtol=1e-5)

    # Ragged / tiny batch path (lane padding + slicing inside the wrapper).
    x_small = jax.random.normal(k_x, (7, N_INDEPENDENT), jnp.float32)
    out_small = jax.block_until_ready(hidden_net_forward(x_small, params))
    ref_small = reference_forward(x_small, params)
    assert out_small.shape == (7, N_DEPENDENT)
    assert jnp.allclose(out_small, ref_small, atol=1e-5, rtol=1e-5)

    print("KERNEL_OK")
</pallas_src>

<mosaic_0001>
module attributes {stable_mosaic.version = 11 : i64} {
  func.func @hidden_net_kernel(%arg0: i32, %arg1: memref<16x256xf32, #tpu.memory_space<vmem>>, %arg2: memref<32x16xf32, #tpu.memory_space<vmem>>, %arg3: memref<32x1xf32, #tpu.memory_space<vmem>>, %arg4: memref<2x32x32xf32, #tpu.memory_space<vmem>>, %arg5: memref<2x32x1xf32, #tpu.memory_space<vmem>>, %arg6: memref<4x32xf32, #tpu.memory_space<vmem>>, %arg7: memref<4x1xf32, #tpu.memory_space<vmem>>, %arg8: memref<4x256xf32, #tpu.memory_space<vmem>>) attributes {dimension_semantics = [#tpu.dimension_semantics<arbitrary>], iteration_bounds = array<i64: 1>, scalar_prefetch = 0 : i64, scratch_operands = 0 : i64, tpu.core_type = #tpu.core_type<tc>, window_params = [{transform_indices = @transform_0, window_bounds = array<i64: 16, 256>}, {pipeline_mode = #tpu.pipeline_mode<synchronous>, transform_indices = @transform_1, window_bounds = array<i64: 32, 16>}, {pipeline_mode = #tpu.pipeline_mode<synchronous>, transform_indices = @transform_2, window_bounds = array<i64: 32, 1>}, {pipeline_mode = #tpu.pipeline_mode<synchronous>, transform_indices = @transform_3, window_bounds = array<i64: 2, 32, 32>}, {pipeline_mode = #tpu.pipeline_mode<synchronous>, transform_indices = @transform_4, window_bounds = array<i64: 2, 32, 1>}, {pipeline_mode = #tpu.pipeline_mode<synchronous>, transform_indices = @transform_5, window_bounds = array<i64: 4, 32>}, {pipeline_mode = #tpu.pipeline_mode<synchronous>, transform_indices = @transform_6, window_bounds = array<i64: 4, 1>}, {transform_indices = @transform_7, window_bounds = array<i64: 4, 256>}]} {
    %c0 = arith.constant 0 : index
    %c0_0 = arith.constant 0 : index
    %0 = vector.load %arg1[%c0, %c0_0] : memref<16x256xf32, #tpu.memory_space<vmem>>, vector<16x256xf32>
    %c0_1 = arith.constant 0 : index
    %c0_2 = arith.constant 0 : index
    %1 = vector.load %arg3[%c0_1, %c0_2] : memref<32x1xf32, #tpu.memory_space<vmem>>, vector<32x1xf32>
    %c0_3 = arith.constant 0 : index
    %c0_4 = arith.constant 0 : index
    %2 = vector.load %arg7[%c0_3, %c0_4] : memref<4x1xf32, #tpu.memory_space<vmem>>, vector<4x1xf32>
    %c0_5 = arith.constant 0 : index
    %c0_6 = arith.constant 0 : index
    %3 = vector.load %arg2[%c0_5, %c0_6] : memref<32x16xf32, #tpu.memory_space<vmem>>, vector<32x16xf32>
    %cst = arith.constant dense<0.000000e+00> : vector<32x256xf32>
    %4 = tpu.matmul %3, %0, %cst {dimension_numbers = #tpu.dot_dimension_numbers<[1], [0], [0], [1], [0, 0, 1, 1], [], []>} : vector<32x16xf32>, vector<16x256xf32>, vector<32x256xf32> -> vector<32x256xf32>
    %5 = vector.broadcast %1 : vector<32x1xf32> to vector<32x256xf32>
    %6 = arith.addf %4, %5 : vector<32x256xf32>
    %7 = math.tanh %6 : vector<32x256xf32>
    %c0_7 = arith.constant 0 : index
    %c0_8 = arith.constant 0 : index
    %c0_9 = arith.constant 0 : index
    %8 = vector.load %arg4[%c0_7, %c0_8, %c0_9] : memref<2x32x32xf32, #tpu.memory_space<vmem>>, vector<1x32x32xf32>
    %9 = vector.shape_cast %8 : vector<1x32x32xf32> to vector<32x32xf32>
    %cst_10 = arith.constant dense<0.000000e+00> : vector<32x256xf32>
    %10 = tpu.matmul %9, %7, %cst_10 {dimension_numbers = #tpu.dot_dimension_numbers<[1], [0], [0], [1], [0, 0, 1, 1], [], []>} : vector<32x32xf32>, vector<32x256xf32>, vector<32x256xf32> -> vector<32x256xf32>
    %c0_11 = arith.constant 0 : index
    %c0_12 = arith.constant 0 : index
    %c0_13 = arith.constant 0 : index
    %11 = vector.load %arg5[%c0_11, %c0_12, %c0_13] : memref<2x32x1xf32, #tpu.memory_space<vmem>>, vector<1x32x1xf32>
    %12 = vector.shape_cast %11 : vector<1x32x1xf32> to vector<32x1xf32>
    %13 = vector.broadcast %12 : vector<32x1xf32> to vector<32x256xf32>
    %14 = arith.addf %10, %13 : vector<32x256xf32>
    %15 = math.tanh %14 : vector<32x256xf32>
    %c1 = arith.constant 1 : index
    %c0_14 = arith.constant 0 : index
    %c0_15 = arith.constant 0 : index
    %16 = vector.load %arg4[%c1, %c0_14, %c0_15] : memref<2x32x32xf32, #tpu.memory_space<vmem>>, vector<1x32x32xf32>
    %17 = vector.shape_cast %16 : vector<1x32x32xf32> to vector<32x32xf32>
    %cst_16 = arith.constant dense<0.000000e+00> : vector<32x256xf32>
    %18 = tpu.matmul %17, %15, %cst_16 {dimension_numbers = #tpu.dot_dimension_numbers<[1], [0], [0], [1], [0, 0, 1, 1], [], []>} : vector<32x32xf32>, vector<32x256xf32>, vector<32x256xf32> -> vector<32x256xf32>
    %c1_17 = arith.constant 1 : index
    %c0_18 = arith.constant 0 : index
    %c0_19 = arith.constant 0 : index
    %19 = vector.load %arg5[%c1_17, %c0_18, %c0_19] : memref<2x32x1xf32, #tpu.memory_space<vmem>>, vector<1x32x1xf32>
    %20 = vector.shape_cast %19 : vector<1x32x1xf32> to vector<32x1xf32>
    %21 = vector.broadcast %20 : vector<32x1xf32> to vector<32x256xf32>
    %22 = arith.addf %18, %21 : vector<32x256xf32>
    %23 = math.tanh %22 : vector<32x256xf32>
    %c0_20 = arith.constant 0 : index
    %c0_21 = arith.constant 0 : index
    %24 = vector.load %arg6[%c0_20, %c0_21] : memref<4x32xf32, #tpu.memory_space<vmem>>, vector<4x32xf32>
    %cst_22 = arith.constant dense<0.000000e+00> : vector<4x256xf32>
    %25 = tpu.matmul %24, %23, %cst_22 {dimension_numbers = #tpu.dot_dimension_numbers<[1], [0], [0], [1], [0, 0, 1, 1], [], []>} : vector<4x32xf32>, vector<32x256xf32>, vector<4x256xf32> -> vector<4x256xf32>
    %26 = vector.broadcast %2 : vector<4x1xf32> to vector<4x256xf32>
    %27 = arith.addf %25, %26 : vector<4x256xf32>
    %c0_23 = arith.constant 0 : index
    %c0_24 = arith.constant 0 : index
    %28 = vector.load %arg8[%c0_23, %c0_24] : memref<4x256xf32, #tpu.memory_space<vmem>>, vector<4x256xf32>
    tpu.vector_store %arg8[%c0_23, %c0_24], %27 {strides = array<i32>} : memref<4x256xf32, #tpu.memory_space<vmem>>, vector<4x256xf32>,
    return
  }
  func.func @transform_0(%arg0: i32) -> (i32, i32) {
    %c0_i32 = arith.constant 0 : i32
    %c0_i32_0 = arith.constant 0 : i32
    return %c0_i32, %arg0 : i32, i32
  }
  func.func @transform_1(%arg0: i32) -> (i32, i32) {
    %c0_i32 = arith.constant 0 : i32
    %c0_i32_0 = arith.constant 0 : i32
    %c0_i32_1 = arith.constant 0 : i32
    return %c0_i32, %c0_i32_0 : i32, i32
  }
  func.func @transform_2(%arg0: i32) -> (i32, i32) {
    %c0_i32 = arith.constant 0 : i32
    %c0_i32_0 = arith.constant 0 : i32
    %c0_i32_1 = arith.constant 0 : i32
    return %c0_i32, %c0_i32_0 : i32, i32
  }
  func.func @transform_3(%arg0: i32) -> (i32, i32, i32) {
    %c0_i32 = arith.constant 0 : i32
    %c0_i32_0 = arith.constant 0 : i32
    %c0_i32_1 = arith.constant 0 : i32
    %c0_i32_2 = arith.constant 0 : i32
    return %c0_i32, %c0_i32_0, %c0_i32_1 : i32, i32, i32
  }
  func.func @transform_4(%arg0: i32) -> (i32, i32, i32) {
    %c0_i32 = arith.constant 0 : i32
    %c0_i32_0 = arith.constant 0 : i32
    %c0_i32_1 = arith.constant 0 : i32
    %c0_i32_2 = arith.constant 0 : i32
    return %c0_i32, %c0_i32_0, %c0_i32_1 : i32, i32, i32
  }
  func.func @transform_5(%arg0: i32) -> (i32, i32) {
    %c0_i32 = arith.constant 0 : i32
    %c0_i32_0 = arith.constant 0 : i32
    %c0_i32_1 = arith.constant 0 : i32
    return %c0_i32, %c0_i32_0 : i32, i32
  }
  func.func @transform_6(%arg0: i32) -> (i32, i32) {
    %c0_i32 = arith.constant 0 : i32
    %c0_i32_0 = arith.constant 0 : i32
    %c0_i32_1 = arith.constant 0 : i32
    return %c0_i32, %c0_i32_0 : i32, i32
  }
  func.func @transform_7(%arg0: i32) -> (i32, i32) {
    %c0_i32 = arith.constant 0 : i32
    %c0_i32_0 = arith.constant 0 : i32
    return %c0_i32, %arg0 : i32, i32
  }
}

</mosaic_0001>

<llo_original>
// kernel: hidden_net_forward.1
$region0: #{hidden_net_forward.1}
  #allocation0 [shape = 'u32[]', space=smem, size = 0x4, offset = 0x4, fixed_abs, tag = 'smem constant byte address 0x4 - core index']
  #allocation1 [shape = 'u32[144,128]{1,0:T(1,128)}', space=vmem, size = 0x12000, scoped, tag = 'internal scratch']
  %s0 = inlined_call_operand.vmem [shape: f32[16,256], index: 0, kind: input, shape index: {}]
  %s1 = inlined_call_operand.vmem [shape: f32[32,16], index: 1, kind: input, shape index: {}]
  %s2 = inlined_call_operand.vmem [shape: f32[32,1], index: 2, kind: input, shape index: {}]
  %s3 = inlined_call_operand.vmem [shape: f32[2,32,32], index: 3, kind: input, shape index: {}]
  %s4 = inlined_call_operand.vmem [shape: f32[2,32,1], index: 4, kind: input, shape index: {}]
  %s5 = inlined_call_operand.vmem [shape: f32[4,32], index: 5, kind: input, shape index: {}]
  %s6 = inlined_call_operand.vmem [shape: f32[4,1], index: 6, kind: input, shape index: {}]
  %s7 = inlined_call_operand.hbm [shape: f32[4,256], index: 7, kind: output, shape index: {}]
  %s8 = sld [smem:[#allocation0]]
  $region38: #{hidden_net_forward.1} parent=0
    _
  %s10 = ssub.s32 1, %s8
  %s11 = scalar_select 0, %s10, %s8
  $region1: #{hidden_net_forward.1} parent=0
    #allocation2 [shape = 'u8[4096]{0}', space=vmem, size = 0x1000, scoped, tag = 'output window, operand 0, single buffered']
    #allocation3 [shape = 's32[1]{0}', space=sflag, size = 0x4, scoped, tag = 'scoped memory for hidden_net_forward.1']
    %12 = vsyncpa [#allocation3], 0
    // Predicated region
    $region2: #{hidden_net_forward.1} parent=1 // pred_check
      _
    $region3: #{hidden_net_forward.1} parent=1 // pred_check_branch
      %14 = sbr.rel (0) target = $region5
    $region4: #{hidden_net_forward.1} parent=1 // pred_region
      _
    $region5: #{hidden_net_forward.1} parent=1 // pred_fallthru
      _
    // Predicated region
    $region6: #{hidden_net_forward.1} parent=1 // pred_check
      _
    $region7: #{hidden_net_forward.1} parent=1 // pred_check_branch
      %16 = sbr.rel (0) target = $region9
    $region8: #{hidden_net_forward.1} parent=1 // pred_region
      _
    $region9: #{hidden_net_forward.1} parent=1 // pred_fallthru
      _
    // Predicated region
    $region10: #{hidden_net_forward.1} parent=1 // pred_check
      _
    $region11: #{hidden_net_forward.1} parent=1 // pred_check_branch
      %18 = sbr.rel (0) target = $region13
    $region12: #{hidden_net_forward.1} parent=1 // pred_region
      _
    $region13: #{hidden_net_forward.1} parent=1 // pred_fallthru
      _
    // Predicated region
    $region14: #{hidden_net_forward.1} parent=1 // pred_check
      _
    $region15: #{hidden_net_forward.1} parent=1 // pred_check_branch
      %20 = sbr.rel (0) target = $region17
    $region16: #{hidden_net_forward.1} parent=1 // pred_region
      _
    $region17: #{hidden_net_forward.1} parent=1 // pred_fallthru
      _
    // Predicated region
    $region18: #{hidden_net_forward.1} parent=1 // pred_check
      _
    $region19: #{hidden_net_forward.1} parent=1 // pred_check_branch
      %22 = sbr.rel (0) target = $region21
    $region20: #{hidden_net_forward.1} parent=1 // pred_region
      _
    $region21: #{hidden_net_forward.1} parent=1 // pred_fallthru
      _
    // Predicated region
    $region22: #{hidden_net_forward.1} parent=1 // pred_check
      _
    $region23: #{hidden_net_forward.1} parent=1 // pred_check_branch
      %24 = sbr.rel (0) target = $region25
    $region24: #{hidden_net_forward.1} parent=1 // pred_region
      _
    $region25: #{hidden_net_forward.1} parent=1 // pred_fallthru
      _
    // Predicated region
    $region26: #{hidden_net_forward.1} parent=1 // pred_check
      _
    $region27: #{hidden_net_forward.1} parent=1 // pred_check_branch
      %26 = sbr.rel (0) target = $region29
    $region28: #{hidden_net_forward.1} parent=1 // pred_region
      _
    $region29: #{hidden_net_forward.1} parent=1 // pred_fallthru
      _
    %v27 = vld [vmem:[%s0] sm:$0xff]
    %v28 = vld [vmem:[%s0 + $0x8] sm:$0xff]
    %v29 = vld [vmem:[%s0 + $0x10] sm:$0xff]
    %v30 = vld [vmem:[%s0 + $0x18] sm:$0xff]
    %v31 = vld [vmem:[%s2] sm:$0xff]
    %v32 = vld [vmem:[%s2 + $0x8] sm:$0xff]
    %v33 = vld [vmem:[%s2 + $0x10] sm:$0xff]
    %v34 = vld [vmem:[%s2 + $0x18] sm:$0xff]
    %v35 = vld [vmem:[%s6] sm:$0xf]
    %v36 = vld [vmem:[%s1] sm:$0xff]
    %v37 = vld [vmem:[%s1 + $0x8] sm:$0xff]
    %v38 = vld [vmem:[%s1 + $0x10] sm:$0xff]
    %v39 = vld [vmem:[%s1 + $0x18] sm:$0xff]
    %41 = vset.pattern.permute.xlu0 0
    %42 = vperm.xlu0 %41, %v31
    %v43 = vpop.permute.xlu0 %42
    %46 = vset.pattern.permute.xlu0 0
    %47 = vperm.xlu0 %46, %v32
    %v48 = vpop.permute.xlu0 %47
    %51 = vset.pattern.permute.xlu0 0
    %52 = vperm.xlu0 %51, %v33
    %v53 = vpop.permute.xlu0 %52
    %56 = vset.pattern.permute.xlu0 0
    %57 = vperm.xlu0 %56, %v34
    %v58 = vpop.permute.xlu0 %57
    %vm60 = vcmask 130048
    %v62 = vsel %vm60, %v36, 0
    %v65 = vsel %vm60, %v37, 0
    %v68 = vsel %vm60, %v38, 0
    %v71 = vsel %vm60, %v39, 0
    %73 = vmatprep.subr.mxu0 0.0
    %74 = vmatpush1.msra.mxu0 0.0
    %75 = vmatprep.subr.mxu0 0.0
    %76 = vmatpush1.msra.mxu0 0.0
    %77 = vmatprep.subr.mxu0 0.0
    %78 = vmatpush1.msra.mxu0 0.0
    %79 = vmatprep.subr.mxu0 0.0
    %80 = vmatpush1.msra.mxu0 0.0
    %81 = vmatprep.subr.mxu0 0.0
    %82 = vmatpush1.msra.mxu0 0.0
    %83 = vmatprep.subr.mxu0 0.0
    %84 = vmatpush1.msra.mxu0 0.0
    %85 = vmatprep.subr.mxu0 0.0
    %86 = vmatpush1.msra.mxu0 0.0
    %87 = vmatprep.subr.mxu0 0.0
    %88 = vmatpush1.msra.mxu0 0.0
    %89 = vmatprep.subr.mxu0 0.0
    %90 = vmatpush1.msra.mxu0 0.0
    %91 = vmatprep.subr.mxu0 0.0
    %92 = vmatpush1.msra.mxu0 0.0
    %93 = vmatprep.subr.mxu0 0.0
    %94 = vmatpush1.msra.mxu0 0.0
    %95 = vmatprep.subr.mxu0 0.0
    %96 = vmatpush1.msra.mxu0 0.0
    %97 = vmatprep.subr.mxu0 0.0
    %98 = vmatpush1.msra.mxu0 0.0
    %99 = vmatprep.subr.mxu0 0.0
    %100 = vmatpush1.msra.mxu0 0.0
    %101 = vmatprep.subr.mxu0 %v30
    %102 = vmatpush1.msra.mxu0 %v29
    %103 = vmatprep.subr.mxu0 %v28
    %104 = vmatpush1.msra.mxu0 %v27
    %105 = vmatprep.subr.mxu0 0.0
    %106 = vmatpush2.msra.mxu0 0.0
    %107 = vmatprep.subr.mxu0 0.0
    %108 = vmatpush2.msra.mxu0 0.0
    %109 = vmatprep.subr.mxu0 0.0
    %110 = vmatpush2.msra.mxu0 0.0
    %111 = vmatprep.subr.mxu0 0.0
    %112 = vmatpush2.msra.mxu0 0.0
    %113 = vmatprep.subr.mxu0 0.0
    %114 = vmatpush2.msra.mxu0 0.0
    %115 = vmatprep.subr.mxu0 0.0
    %116 = vmatpush2.msra.mxu0 0.0
    %117 = vmatprep.subr.mxu0 0.0
    %118 = vmatpush2.msra.mxu0 0.0
    %119 = vmatprep.subr.mxu0 0.0
    %120 = vmatpush2.msra.mxu0 0.0
    %121 = vmatprep.subr.mxu0 0.0
    %122 = vmatpush2.msra.mxu0 0.0
    %123 = vmatprep.subr.mxu0 0.0
    %124 = vmatpush2.msra.mxu0 0.0
    %125 = vmatprep.subr.mxu0 0.0
    %126 = vmatpush2.msra.mxu0 0.0
    %127 = vmatprep.subr.mxu0 0.0
    %128 = vmatpush2.msra.mxu0 0.0
    %129 = vmatprep.subr.mxu0 0.0
    %130 = vmatpush2.msra.mxu0 0.0
    %131 = vmatprep.subr.mxu0 0.0
    %132 = vmatpush2.msra.mxu0 0.0
    %133 = vmatprep.subr.mxu0 0.0
    %134 = vmatpush2.msra.mxu0 0.0
    %135 = vmatprep.subr.mxu0 0.0
    %136 = vmatpush2.msra.mxu0 0.0
    %137 = vmatprep.mubr.f32.mxu0 0.0
    %138 = vmatmul.mubr.f32.gmra.mxu0 %v62
    %v139 = vpop.f32.mrf.mxu0
    %v140 = vadd.f32 %v43, %v139
    %v141 = vpop.f32.mrf.mxu0
    %v142 = vadd.f32 %v43, %v141
    %143 = vmatprep.mubr.f32.mxu0 0.0
    %144 = vmatmul.mubr.f32.gmra.mxu0 %v65
    %v145 = vpop.f32.mrf.mxu0
    %v146 = vadd.f32 %v48, %v145
    %v147 = vpop.f32.mrf.mxu0
    %v148 = vadd.f32 %v48, %v147
    %149 = vmatprep.mubr.f32.mxu0 0.0
    %150 = vmatmul.mubr.f32.gmra.mxu0 %v68
    %v151 = vpop.f32.mrf.mxu0
    %v152 = vadd.f32 %v53, %v151
    %v153 = vpop.f32.mrf.mxu0
    %v154 = vadd.f32 %v53, %v153
    %155 = vmatprep.mubr.f32.mxu0 0.0
    %156 = vmatmul.mubr.f32.gmra.mxu0 %v71
    %v157 = vpop.f32.mrf.mxu0
    %v158 = vadd.f32 %v58, %v157
    %v159 = vpop.f32.mrf.mxu0
    %v160 = vadd.f32 %v58, %v159
    %161 = vdwg.mxu0
    %v162 = vtanh.pop %v140
    %v163 = vtanh.pop %v142
    %v164 = vtanh.pop %v146
    %v165 = vtanh.pop %v148
    %v166 = vtanh.pop %v152
    %v167 = vtanh.pop %v154
    %v168 = vtanh.pop %v158
    %v169 = vtanh.pop %v160
    %v170 = vld [vmem:[%s3] sm:$0xff]
    %v171 = vld [vmem:[%s3 + $0x8] sm:$0xff]
    %v172 = vld [vmem:[%s3 + $0x10] sm:$0xff]
    %v173 = vld [vmem:[%s3 + $0x18] sm:$0xff]
    %v174 = vld [vmem:[%s4] sm:$0xff]
    %v175 = vld [vmem:[%s4 + $0x8] sm:$0xff]
    %v176 = vld [vmem:[%s4 + $0x10] sm:$0xff]
    %v177 = vld [vmem:[%s4 + $0x18] sm:$0xff]
    %179 = vset.pattern.permute.xlu0 0
    %180 = vperm.xlu0 %179, %v174
    %v181 = vpop.permute.xlu0 %180
    %184 = vset.pattern.permute.xlu0 0
    %185 = vperm.xlu0 %184, %v175
    %v186 = vpop.permute.xlu0 %185
    %189 = vset.pattern.permute.xlu0 0
    %190 = vperm.xlu0 %189, %v176
    %v191 = vpop.permute.xlu0 %190
    %194 = vset.pattern.permute.xlu0 0
    %195 = vperm.xlu0 %194, %v177
    %v196 = vpop.permute.xlu0 %195
    %vm198 = vcmask 261120
    %v200 = vsel %vm198, %v170, 0
    %v203 = vsel %vm198, %v171, 0
    %v206 = vsel %vm198, %v172, 0
    %v209 = vsel %vm198, %v173, 0
    %211 = vmatprep.subr.mxu0 0.0
    %212 = vmatpush1.msra.mxu0 0.0
    %213 = vmatprep.subr.mxu0 0.0
    %214 = vmatpush1.msra.mxu0 0.0
    %215 = vmatprep.subr.mxu0 0.0
    %216 = vmatpush1.msra.mxu0 0.0
    %217 = vmatprep.subr.mxu0 0.0
    %218 = vmatpush1.msra.mxu0 0.0
    %219 = vmatprep.subr.mxu0 0.0
    %220 = vmatpush1.msra.mxu0 0.0
    %221 = vmatprep.subr.mxu0 0.0
    %222 = vmatpush1.msra.mxu0 0.0
    %223 = vmatprep.subr.mxu0 0.0
    %224 = vmatpush1.msra.mxu0 0.0
    %225 = vmatprep.subr.mxu0 0.0
    %226 = vmatpush1.msra.mxu0 0.0
    %227 = vmatprep.subr.mxu0 0.0
    %228 = vmatpush1.msra.mxu0 0.0
    %229 = vmatprep.subr.mxu0 0.0
    %230 = vmatpush1.msra.mxu0 0.0
    %231 = vmatprep.subr.mxu0 0.0
    %232 = vmatpush1.msra.mxu0 0.0
    %233 = vmatprep.subr.mxu0 0.0
    %234 = vmatpush1.msra.mxu0 0.0
    %235 = vmatprep.subr.mxu0 %v169
    %236 = vmatpush1.msra.mxu0 %v168
    %237 = vmatprep.subr.mxu0 %v167
    %238 = vmatpush1.msra.mxu0 %v166
    %239 = vmatprep.subr.mxu0 %v165
    %240 = vmatpush1.msra.mxu0 %v164
    %241 = vmatprep.subr.mxu0 %v163
    %242 = vmatpush1.msra.mxu0 %v162
    %243 = vmatprep.subr.mxu0 0.0
    %244 = vmatpush2.msra.mxu0 0.0
    %245 = vmatprep.subr.mxu0 0.0
    %246 = vmatpush2.msra.mxu0 0.0
    %247 = vmatprep.subr.mxu0 0.0
    %248 = vmatpush2.msra.mxu0 0.0
    %249 = vmatprep.subr.mxu0 0.0
    %250 = vmatpush2.msra.mxu0 0.0
    %251 = vmatprep.subr.mxu0 0.0
    %252 = vmatpush2.msra.mxu0 0.0
    %253 = vmatprep.subr.mxu0 0.0
    %254 = vmatpush2.msra.mxu0 0.0
    %255 = vmatprep.subr.mxu0 0.0
    %256 = vmatpush2.msra.mxu0 0.0
    %257 = vmatprep.subr.mxu0 0.0
    %258 = vmatpush2.msra.mxu0 0.0
    %259 = vmatprep.subr.mxu0 0.0
    %260 = vmatpush2.msra.mxu0 0.0
    %261 = vmatprep.subr.mxu0 0.0
    %262 = vmatpush2.msra.mxu0 0.0
    %263 = vmatprep.subr.mxu0 0.0
    %264 = vmatpush2.msra.mxu0 0.0
    %265 = vmatprep.subr.mxu0 0.0
    %266 = vmatpush2.msra.mxu0 0.0
    %267 = vmatprep.subr.mxu0 0.0
    %268 = vmatpush2.msra.mxu0 0.0
    %269 = vmatprep.subr.mxu0 0.0
    %270 = vmatpush2.msra.mxu0 0.0
    %271 = vmatprep.subr.mxu0 0.0
    %272 = vmatpush2.msra.mxu0 0.0
    %273 = vmatprep.subr.mxu0 0.0
    %274 = vmatpush2.msra.mxu0 0.0
    %275 = vmatprep.mubr.f32.mxu0 0.0
    %276 = vmatmul.mubr.f32.gmra.mxu0 %v200
    %v277 = vpop.f32.mrf.mxu0
    %v278 = vadd.f32 %v181, %v277
    %v279 = vpop.f32.mrf.mxu0
    %v280 = vadd.f32 %v181, %v279
    %281 = vmatprep.mubr.f32.mxu0 0.0
    %282 = vmatmul.mubr.f32.gmra.mxu0 %v203
    %v283 = vpop.f32.mrf.mxu0
    %v284 = vadd.f32 %v186, %v283
    %v285 = vpop.f32.mrf.mxu0
    %v286 = vadd.f32 %v186, %v285
    %287 = vmatprep.mubr.f32.mxu0 0.0
    %288 = vmatmul.mubr.f32.gmra.mxu0 %v206
    %v289 = vpop.f32.mrf.mxu0
    %v290 = vadd.f32 %v191, %v289
    %v291 = vpop.f32.mrf.mxu0
    %v292 = vadd.f32 %v191, %v291
    %293 = vmatprep.mubr.f32.mxu0 0.0
    %294 = vmatmul.mubr.f32.gmra.mxu0 %v209
    %v295 = vpop.f32.mrf.mxu0
    %v296 = vadd.f32 %v196, %v295
    %v297 = vpop.f32.mrf.mxu0
    %v298 = vadd.f32 %v196, %v297
    %299 = vdwg.mxu0
    %v300 = vtanh.pop %v278
    %v301 = vtanh.pop %v280
    %v302 = vtanh.pop %v284
    %v303 = vtanh.pop %v286
    %v304 = vtanh.pop %v290
    %v305 = vtanh.pop %v292
    %v306 = vtanh.pop %v296
    %v307 = vtanh.pop %v298
    %s308 = scalar_lea.vmem %s3, 32
    %v309 = vld [vmem:[%s308] sm:$0xff]
    %v310 = vld [vmem:[%s308 + $0x8] sm:$0xff]
    %v311 = vld [vmem:[%s308 + $0x10] sm:$0xff]
    %v312 = vld [vmem:[%s308 + $0x18] sm:$0xff]
    %s313 = scalar_lea.vmem %s4, 32
    %v314 = vld [vmem:[%s313] sm:$0xff]
    %v315 = vld [vmem:[%s313 + $0x8] sm:$0xff]
    %v316 = vld [vmem:[%s313 + $0x10] sm:$0xff]
    %v317 = vld [vmem:[%s313 + $0x18] sm:$0xff]
    %319 = vset.pattern.permute.xlu0 0
    %320 = vperm.xlu0 %319, %v314
    %v321 = vpop.permute.xlu0 %320
    %324 = vset.pattern.permute.xlu0 0
    %325 = vperm.xlu0 %324, %v315
    %v326 = vpop.permute.xlu0 %325
    %329 = vset.pattern.permute.xlu0 0
    %330 = vperm.xlu0 %329, %v316
    %v331 = vpop.permute.xlu0 %330
    %334 = vset.pattern.permute.xlu0 0
    %335 = vperm.xlu0 %334, %v317
    %v336 = vpop.permute.xlu0 %335
    %v339 = vsel %vm198, %v309, 0
    %v342 = vsel %vm198, %v310, 0
    %v345 = vsel %vm198, %v311, 0
    %v348 = vsel %vm198, %v312, 0
    %350 = vmatprep.subr.mxu0 0.0
    %351 = vmatpush1.msra.mxu0 0.0
    %352 = vmatprep.subr.mxu0 0.0
    %353 = vmatpush1.msra.mxu0 0.0
    %354 = vmatprep.subr.mxu0 0.0
    %355 = vmatpush1.msra.mxu0 0.0
    %356 = vmatprep.subr.mxu0 0.0
    %357 = vmatpush1.msra.mxu0 0.0
    %358 = vmatprep.subr.mxu0 0.0
    %359 = vmatpush1.msra.mxu0 0.0
    %360 = vmatprep.subr.mxu0 0.0
    %361 = vmatpush1.msra.mxu0 0.0
    %362 = vmatprep.subr.mxu0 0.0
    %363 = vmatpush1.msra.mxu0 0.0
    %364 = vmatprep.subr.mxu0 0.0
    %365 = vmatpush1.msra.mxu0 0.0
    %366 = vmatprep.subr.mxu0 0.0
    %367 = vmatpush1.msra.mxu0 0.0
    %368 = vmatprep.subr.mxu0 0.0
    %369 = vmatpush1.msra.mxu0 0.0
    %370 = vmatprep.subr.mxu0 0.0
    %371 = vmatpush1.msra.mxu0 0.0
    %372 = vmatprep.subr.mxu0 0.0
    %373 = vmatpush1.msra.mxu0 0.0
    %374 = vmatprep.subr.mxu0 %v307
    %375 = vmatpush1.msra.mxu0 %v306
    %376 = vmatprep.subr.mxu0 %v305
    %377 = vmatpush1.msra.mxu0 %v304
    %378 = vmatprep.subr.mxu0 %v303
    %379 = vmatpush1.msra.mxu0 %v302
    %380 = vmatprep.subr.mxu0 %v301
    %381 = vmatpush1.msra.mxu0 %v300
    %382 = vmatprep.subr.mxu0 0.0
    %383 = vmatpush2.msra.mxu0 0.0
    %384 = vmatprep.subr.mxu0 0.0
    %385 = vmatpush2.msra.mxu0 0.0
    %386 = vmatprep.subr.mxu0 0.0
    %387 = vmatpush2.msra.mxu0 0.0
    %388 = vmatprep.subr.mxu0 0.0
    %389 = vmatpush2.msra.mxu0 0.0
    %390 = vmatprep.subr.mxu0 0.0
    %391 = vmatpush2.msra.mxu0 0.0
    %392 = vmatprep.subr.mxu0 0.0
    %393 = vmatpush2.msra.mxu0 0.0
    %394 = vmatprep.subr.mxu0 0.0
    %395 = vmatpush2.msra.mxu0 0.0
    %396 = vmatprep.subr.mxu0 0.0
    %397 = vmatpush2.msra.mxu0 0.0
    %398 = vmatprep.subr.mxu0 0.0
    %399 = vmatpush2.msra.mxu0 0.0
    %400 = vmatprep.subr.mxu0 0.0
    %401 = vmatpush2.msra.mxu0 0.0
    %402 = vmatprep.subr.mxu0 0.0
    %403 = vmatpush2.msra.mxu0 0.0
    %404 = vmatprep.subr.mxu0 0.0
    %405 = vmatpush2.msra.mxu0 0.0
    %406 = vmatprep.subr.mxu0 0.0
    %407 = vmatpush2.msra.mxu0 0.0
    %408 = vmatprep.subr.mxu0 0.0
    %409 = vmatpush2.msra.mxu0 0.0
    %410 = vmatprep.subr.mxu0 0.0
    %411 = vmatpush2.msra.mxu0 0.0
    %412 = vmatprep.subr.mxu0 0.0
    %413 = vmatpush2.msra.mxu0 0.0
    %414 = vmatprep.mubr.f32.mxu0 0.0
    %415 = vmatmul.mubr.f32.gmra.mxu0 %v339
    %v416 = vpop.f32.mrf.mxu0
    %v417 = vadd.f32 %v321, %v416
    %v418 = vpop.f32.mrf.mxu0
    %v419 = vadd.f32 %v321, %v418
    %420 = vmatprep.mubr.f32.mxu0 0.0
    %421 = vmatmul.mubr.f32.gmra.mxu0 %v342
    %v422 = vpop.f32.mrf.mxu0
    %v423 = vadd.f32 %v326, %v422
    %v424 = vpop.f32.mrf.mxu0
    %v425 = vadd.f32 %v326, %v424
    %426 = vmatprep.mubr.f32.mxu0 0.0
    %427 = vmatmul.mubr.f32.gmra.mxu0 %v345
    %v428 = vpop.f32.mrf.mxu0
    %v429 = vadd.f32 %v331, %v428
    %v430 = vpop.f32.mrf.mxu0
    %v431 = vadd.f32 %v331, %v430
    %432 = vmatprep.mubr.f32.mxu0 0.0
    %433 = vmatmul.mubr.f32.gmra.mxu0 %v348
    %v434 = vpop.f32.mrf.mxu0
    %v435 = vadd.f32 %v336, %v434
    %v436 = vpop.f32.mrf.mxu0
    %v437 = vadd.f32 %v336, %v436
    %438 = vdwg.mxu0
    %v439 = vtanh.pop %v417
    %v440 = vtanh.pop %v419
    %v441 = vtanh.pop %v423
    %v442 = vtanh.pop %v425
    %v443 = vtanh.pop %v429
    %v444 = vtanh.pop %v431
    %v445 = vtanh.pop %v435
    %v446 = vtanh.pop %v437
    %v447 = vld [vmem:[%s5] sm:$0xf]
    %449 = vset.pattern.permute.xlu0 0
    %450 = vperm.xlu0 %449, %v35
    %v451 = vpop.permute.xlu0 %450
    %v454 = vsel %vm198, %v447, 0
    %456 = vmatprep.subr.mxu0 0.0
    %457 = vmatpush1.msra.mxu0 0.0
    %458 = vmatprep.subr.mxu0 0.0
    %459 = vmatpush1.msra.mxu0 0.0
    %460 = vmatprep.subr.mxu0 0.0
    %461 = vmatpush1.msra.mxu0 0.0
    %462 = vmatprep.subr.mxu0 0.0
    %463 = vmatpush1.msra.mxu0 0.0
    %464 = vmatprep.subr.mxu0 0.0
    %465 = vmatpush1.msra.mxu0 0.0
    %466 = vmatprep.subr.mxu0 0.0
    %467 = vmatpush1.msra.mxu0 0.0
    %468 = vmatprep.subr.mxu0 0.0
    %469 = vmatpush1.msra.mxu0 0.0
    %470 = vmatprep.subr.mxu0 0.0
    %471 = vmatpush1.msra.mxu0 0.0
    %472 = vmatprep.subr.mxu0 0.0
    %473 = vmatpush1.msra.mxu0 0.0
    %474 = vmatprep.subr.mxu0 0.0
    %475 = vmatpush1.msra.mxu0 0.0
    %476 = vmatprep.subr.mxu0 0.0
    %477 = vmatpush1.msra.mxu0 0.0
    %478 = vmatprep.subr.mxu0 0.0
    %479 = vmatpush1.msra.mxu0 0.0
    %480 = vmatprep.subr.mxu0 %v446
    %481 = vmatpush1.msra.mxu0 %v445
    %482 = vmatprep.subr.mxu0 %v444
    %483 = vmatpush1.msra.mxu0 %v443
    %484 = vmatprep.subr.mxu0 %v442
    %485 = vmatpush1.msra.mxu0 %v441
    %486 = vmatprep.subr.mxu0 %v440
    %487 = vmatpush1.msra.mxu0 %v439
    %488 = vmatprep.subr.mxu0 0.0
    %489 = vmatpush2.msra.mxu0 0.0
    %490 = vmatprep.subr.mxu0 0.0
    %491 = vmatpush2.msra.mxu0 0.0
    %492 = vmatprep.subr.mxu0 0.0
    %493 = vmatpush2.msra.mxu0 0.0
    %494 = vmatprep.subr.mxu0 0.0
    %495 = vmatpush2.msra.mxu0 0.0
    %496 = vmatprep.subr.mxu0 0.0
    %497 = vmatpush2.msra.mxu0 0.0
    %498 = vmatprep.subr.mxu0 0.0
    %499 = vmatpush2.msra.mxu0 0.0
    %500 = vmatprep.subr.mxu0 0.0
    %501 = vmatpush2.msra.mxu0 0.0
    %502 = vmatprep.subr.mxu0 0.0
    %503 = vmatpush2.msra.mxu0 0.0
    %504 = vmatprep.subr.mxu0 0.0
    %505 = vmatpush2.msra.mxu0 0.0
    %506 = vmatprep.subr.mxu0 0.0
    %507 = vmatpush2.msra.mxu0 0.0
    %508 = vmatprep.subr.mxu0 0.0
    %509 = vmatpush2.msra.mxu0 0.0
    %510 = vmatprep.subr.mxu0 0.0
    %511 = vmatpush2.msra.mxu0 0.0
    %512 = vmatprep.subr.mxu0 0.0
    %513 = vmatpush2.msra.mxu0 0.0
    %514 = vmatprep.subr.mxu0 0.0
    %515 = vmatpush2.msra.mxu0 0.0
    %516 = vmatprep.subr.mxu0 0.0
    %517 = vmatpush2.msra.mxu0 0.0
    %518 = vmatprep.subr.mxu0 0.0
    %519 = vmatpush2.msra.mxu0 0.0
    %520 = vmatprep.mubr.f32.mxu0 0.0
    %521 = vmatmul.mubr.f32.gmra.mxu0 %v454
    %v522 = vpop.f32.mrf.mxu0
    %v523 = vadd.f32 %v451, %v522
    %v524 = vpop.f32.mrf.mxu0
    %v525 = vadd.f32 %v451, %v524
    %526 = vdwg.mxu0
    %v529 = vcombine.low %v523, %v525
    %531 = vst [vmem:[#allocation2] sm:$0xff] %v529
    // Predicated region
    $region30: #{hidden_net_forward.1} parent=1 // pred_check
      _
    $region31: #{hidden_net_forward.1} parent=1 // pred_check_branch
      %533 = sbr.rel (0) target = $region33
    $region32: #{hidden_net_forward.1} parent=1 // pred_region
      %s535 = ssub.s32 128, 128
      %536 = vsyncadd [#allocation3], %s535
      %s538 = sshll.u32 [#allocation2], 4
      %s539 = int_to_ptr.vmem [resolvable:$true] %s538
      %541 = dma.vmem_to_hbm [thread:$0]  %s539, 128, %s7, [#allocation3]
    $region33: #{hidden_net_forward.1} parent=1 // pred_fallthru
      _
    // Predicated region
    $region34: #{hidden_net_forward.1} parent=1 // pred_check
      _
    $region35: #{hidden_net_forward.1} parent=1 // pred_check_branch
      %543 = sbr.rel (0) target = $region37
    $region36: #{hidden_net_forward.1} parent=1 // pred_region
      %544 = dma.done [#allocation3], 128
    $region37: #{hidden_net_forward.1} parent=1 // pred_fallthru
      _
    %545 = vsyncpa [#allocation3], 1

</llo_original>
